<compile_context>
chip_gen: v7x
topology: tpu7x:2x2x1
jax: 0.10.0
libtpu: 0.0.40
codegen_flags: <defaults>
</compile_context>

<pallas_src>
import jax
import jax.numpy as jnp
from jax.experimental import pallas as pl
from jax.experimental.pallas import tpu as pltpu


_LANE_CAP = 2048           # preferred lane width (large multiple of 128)
_TARGET_GRID_STEPS = 8     # aim for >= this many grid steps on large inputs


def _sublane_pack(dtype):
    """Native sublane packing for the element type (8 f32 / 16 bf16 / 32 int8)."""
    return {4: 8, 2: 16, 1: 32}.get(jnp.dtype(dtype).itemsize, 8)


def _generation_params():
    """(tile_bytes_per_buffer, vmem_limit_bytes), chosen per TPU generation."""
    vmem_cap = None
    try:
        vmem_cap = getattr(pltpu.get_tpu_info(), "vmem_capacity_bytes", None)
    except Exception:
        vmem_cap = None
    if vmem_cap is None:
        try:
            kind = jax.devices()[0].device_kind.lower()
        except Exception:
            kind = ""
        if "v5" in kind or "v6" in kind:
            vmem_cap = 128 << 20
        else:
            vmem_cap = 64 << 20          # v7x or unknown: be conservative
    if vmem_cap > (64 << 20):
        # v5e / v6e: 128 MiB physical VMEM. 4 MiB tiles -> 6 x 2 x 4 = 48 MiB live.
        return 4 << 20, 64 << 20
    # v7x (64 MiB physical) or unknown. 2 MiB tiles -> 24 MiB live.
    return 2 << 20, 32 << 20


def _factorize(n):
    """Pick (rows, lane, n_pad) with rows * lane == n_pad >= n.

    n_pad == n  =>  the (rows, lane) slab is a zero-copy reshape of the band.
    """
    # 1) Largest multiple-of-128 divisor of n (unmasked, lane-dense stores).
    for k in range(_LANE_CAP // 128, 0, -1):
        lane = 128 * k
        if n % lane == 0:
            return n // lane, lane, n
    # 2) Ragged n: best lane-utilisation divisor (still zero-copy reshape).
    best_lane, best_util = 1, 0.0
    for lane in range(min(n, 2 * _LANE_CAP), 0, -1):
        if n % lane:
            continue
        util = lane / (128.0 * ((lane + 127) // 128))
        if util > best_util:
            best_util, best_lane = util, lane
    if best_lane >= 32:                  # >= 25% lane utilisation: good enough
        return n // best_lane, best_lane, n
    # 3) Pathological (prime-ish) size: pad the tail once (one extra HBM pass).
    n_pad = ((n + 127) // 128) * 128
    for k in range(_LANE_CAP // 128, 0, -1):
        lane = 128 * k
        if n_pad % lane == 0:
            return n_pad // lane, lane, n_pad
    return n_pad // 128, 128, n_pad      # unreachable (lane=128 always divides n_pad)


def _pick_block_rows(rows, lane, itemsize, pack, tile_bytes):
    """Row-block: ~tile_bytes per buffer, but keep >= _TARGET_GRID_STEPS steps."""
    cap_bytes = max(pack, (tile_bytes // (lane * itemsize)) // pack * pack)
    cap_grid = max(pack, (rows // _TARGET_GRID_STEPS) // pack * pack)
    block_rows = min(cap_bytes, cap_grid)
    if block_rows >= rows:
        block_rows = rows                # full extent: single step, always legal
    return block_rows


def _subband_attn_kernel(scales_ref, lh_ref, hl_ref, hh_ref,
                         lh_out_ref, hl_out_ref, hh_out_ref):
    # scales_ref: SMEM (3,) f32, already 0.1 + 0.9 * sigmoid(attn_params).
    lh_out_ref[...] = (lh_ref[...] * scales_ref[0]).astype(lh_out_ref.dtype)
    hl_out_ref[...] = (hl_ref[...] * scales_ref[1]).astype(hl_out_ref.dtype)
    hh_out_ref[...] = (hh_ref[...] * scales_ref[2]).astype(hh_out_ref.dtype)


def subband_attention(attn_params, lh, hl, hh):
    """attn_params: (3,) f32; lh/hl/hh: same shape & dtype (e.g. NCHW bands)."""
    shape, dtype = lh.shape, lh.dtype
    assert hl.shape == shape and hh.shape == shape, "band shapes must match"
    assert hl.dtype == dtype and hh.dtype == dtype, "band dtypes must match"

    # Scales computed once here (3-element op, negligible); kernel sees ready scales.
    scales = 0.1 + 0.9 * jax.nn.sigmoid(attn_params.astype(jnp.float32))

    n = lh.size
    itemsize = jnp.dtype(dtype).itemsize
    pack = _sublane_pack(dtype)
    tile_bytes, vmem_limit = _generation_params()

    rows, lane, n_pad = _factorize(n)
    block_rows = _pick_block_rows(rows, lane, itemsize, pack, tile_bytes)
    # Pallas masks the trailing partial block (OOB reads unused, OOB writes dropped).
    grid_steps = (rows + block_rows - 1) // block_rows

    def to_slab(x):
        flat = x.reshape(-1)
        if n_pad != n:                   # pathological sizes only
            flat = jnp.pad(flat, (0, n_pad - n))
        # Contiguous row-major reshape: lowers to a bitcast, not a relayout copy.
        return flat.reshape(rows, lane)

    lh2, hl2, hh2 = (to_slab(x) for x in (lh, hl, hh))

    slab = jax.ShapeDtypeStruct((rows, lane), dtype)
    tile_spec = pl.BlockSpec((block_rows, lane), lambda r: (r, 0))

    outs = pl.pallas_call(
        _subband_attn_kernel,
        out_shape=(slab, slab, slab),
        grid_spec=pltpu.PrefetchScalarGridSpec(
            num_scalar_prefetch=0,
            grid=(grid_steps,),
            in_specs=[
                pl.BlockSpec(memory_space=pltpu.SMEM),   # scales (3,) in SMEM
                tile_spec,                                # lh
                tile_spec,                                # hl
                tile_spec,                                # hh
            ],
            out_specs=[tile_spec, tile_spec, tile_spec],
        ),
        compiler_params=pltpu.CompilerParams(
            dimension_semantics=("parallel",),            # shard tiles across TCs (v7x)
            vmem_limit_bytes=vmem_limit,                  # explicit, generation-aware
        ),
    )(scales, lh2, hl2, hh2)

    def from_slab(y):
        if n_pad != n:
            return y.reshape(-1)[:n].reshape(shape)
        return y.reshape(shape)          # contiguous reshape: no relayout copy

    return tuple(from_slab(y) for y in outs)


def _check(attn_params, lh, hl, hh, tol=1e-6):
    fn = jax.jit(subband_attention)
    outs = fn(attn_params, lh, hl, hh)
    jax.block_until_ready(outs)
    attn = 0.1 + 0.9 * jax.nn.sigmoid(attn_params)
    refs = (lh.astype(jnp.float32) * attn[0],
            hl.astype(jnp.float32) * attn[1],
            hh.astype(jnp.float32) * attn[2])
    for got, want in zip(outs, refs):
        assert got.shape == want.shape
        assert got.dtype == lh.dtype
        assert jnp.allclose(got.astype(jnp.float32), want, atol=tol, rtol=tol), \
            "mismatch vs reference"


if __name__ == "__main__":
    key = jax.random.PRNGKey(0)
    keys = jax.random.split(key, 9)

    # nn.Parameter(torch.ones(num_bands)) -> deterministic init of ones.
    attn_params = jnp.ones((3,), dtype=jnp.float32)

    # 1) Lane-aligned small shape (n = 2048): zero-copy slab, lane = 2048.
    shp = (2, 4, 16, 16)
    lh, hl, hh = (jax.random.normal(k, shp, dtype=jnp.float32) for k in keys[:3])
    _check(attn_params, lh, hl, hh)

    # 2) Ragged shape (n = 4704, not a multiple of 128): zero-copy divisor path
    #    (lane = 2352, ~97% lane utilisation, no pad / slice round-trip).
    shp = (2, 3, 28, 28)
    lh, hl, hh = (jax.random.normal(k, shp, dtype=jnp.float32) for k in keys[3:6])
    _check(attn_params, lh, hl, hh)

    # 3) Larger bf16 input: exercises the multi-step pipelined grid and the
    #    dtype-aware (16-row) sublane rounding.
    shp = (2, 4, 128, 128)
    lh, hl, hh = (jax.random.normal(k, shp, dtype=jnp.bfloat16) for k in keys[6:9])
    _check(attn_params, lh, hl, hh, tol=5e-2)

    print("KERNEL_OK")
</pallas_src>

<mosaic_0001>
module attributes {stable_mosaic.version = 11 : i64} {
  func.func @_subband_attn_kernel(%arg0: i32, %arg1: memref<3xf32, #tpu.memory_space<smem>>, %arg2: memref<1x2048xf32, #tpu.memory_space<vmem>>, %arg3: memref<1x2048xf32, #tpu.memory_space<vmem>>, %arg4: memref<1x2048xf32, #tpu.memory_space<vmem>>, %arg5: memref<1x2048xf32, #tpu.memory_space<vmem>>, %arg6: memref<1x2048xf32, #tpu.memory_space<vmem>>, %arg7: memref<1x2048xf32, #tpu.memory_space<vmem>>) attributes {dimension_semantics = [#tpu.dimension_semantics<parallel>], iteration_bounds = array<i64: 1>, scalar_prefetch = 0 : i64, scratch_operands = 0 : i64, tpu.core_type = #tpu.core_type<tc>, window_params = [{transform_indices = @transform_0, window_bounds = array<i64: 3>}, {transform_indices = @transform_1, window_bounds = array<i64: 1, 2048>}, {transform_indices = @transform_2, window_bounds = array<i64: 1, 2048>}, {transform_indices = @transform_3, window_bounds = array<i64: 1, 2048>}, {transform_indices = @transform_4, window_bounds = array<i64: 1, 2048>}, {transform_indices = @transform_5, window_bounds = array<i64: 1, 2048>}, {transform_indices = @transform_6, window_bounds = array<i64: 1, 2048>}]} {
    %c0 = arith.constant 0 : index
    %c0_0 = arith.constant 0 : index
    %0 = vector.load %arg2[%c0, %c0_0] : memref<1x2048xf32, #tpu.memory_space<vmem>>, vector<1x2048xf32>
    %c0_1 = arith.constant 0 : index
    %1 = memref.load %arg1[%c0_1] : memref<3xf32, #tpu.memory_space<smem>>
    %2 = vector.broadcast %1 : f32 to vector<1x2048xf32>
    %3 = arith.mulf %0, %2 : vector<1x2048xf32>
    %c0_2 = arith.constant 0 : index
    %c0_3 = arith.constant 0 : index
    %4 = vector.load %arg5[%c0_2, %c0_3] : memref<1x2048xf32, #tpu.memory_space<vmem>>, vector<1x2048xf32>
    tpu.vector_store %arg5[%c0_2, %c0_3], %3 {strides = array<i32>} : memref<1x2048xf32, #tpu.memory_space<vmem>>, vector<1x2048xf32>,
    %c0_4 = arith.constant 0 : index
    %c0_5 = arith.constant 0 : index
    %5 = vector.load %arg3[%c0_4, %c0_5] : memref<1x2048xf32, #tpu.memory_space<vmem>>, vector<1x2048xf32>
    %c1 = arith.constant 1 : index
    %6 = memref.load %arg1[%c1] : memref<3xf32, #tpu.memory_space<smem>>
    %7 = vector.broadcast %6 : f32 to vector<1x2048xf32>
    %8 = arith.mulf %5, %7 : vector<1x2048xf32>
    %c0_6 = arith.constant 0 : index
    %c0_7 = arith.constant 0 : index
    %9 = vector.load %arg6[%c0_6, %c0_7] : memref<1x2048xf32, #tpu.memory_space<vmem>>, vector<1x2048xf32>
    tpu.vector_store %arg6[%c0_6, %c0_7], %8 {strides = array<i32>} : memref<1x2048xf32, #tpu.memory_space<vmem>>, vector<1x2048xf32>,
    %c0_8 = arith.constant 0 : index
    %c0_9 = arith.constant 0 : index
    %10 = vector.load %arg4[%c0_8, %c0_9] : memref<1x2048xf32, #tpu.memory_space<vmem>>, vector<1x2048xf32>
    %c2 = arith.constant 2 : index
    %11 = memref.load %arg1[%c2] : memref<3xf32, #tpu.memory_space<smem>>
    %12 = vector.broadcast %11 : f32 to vector<1x2048xf32>
    %13 = arith.mulf %10, %12 : vector<1x2048xf32>
    %c0_10 = arith.constant 0 : index
    %c0_11 = arith.constant 0 : index
    %14 = vector.load %arg7[%c0_10, %c0_11] : memref<1x2048xf32, #tpu.memory_space<vmem>>, vector<1x2048xf32>
    tpu.vector_store %arg7[%c0_10, %c0_11], %13 {strides = array<i32>} : memref<1x2048xf32, #tpu.memory_space<vmem>>, vector<1x2048xf32>,
    return
  }
  func.func @transform_0(%arg0: i32) -> i32 {
    %c0_i32 = arith.constant 0 : i32
    %c0_i32_0 = arith.constant 0 : i32
    return %c0_i32 : i32
  }
  func.func @transform_1(%arg0: i32) -> (i32, i32) {
    %c0_i32 = arith.constant 0 : i32
    %c0_i32_0 = arith.constant 0 : i32
    return %arg0, %c0_i32 : i32, i32
  }
  func.func @transform_2(%arg0: i32) -> (i32, i32) {
    %c0_i32 = arith.constant 0 : i32
    %c0_i32_0 = arith.constant 0 : i32
    return %arg0, %c0_i32 : i32, i32
  }
  func.func @transform_3(%arg0: i32) -> (i32, i32) {
    %c0_i32 = arith.constant 0 : i32
    %c0_i32_0 = arith.constant 0 : i32
    return %arg0, %c0_i32 : i32, i32
  }
  func.func @transform_4(%arg0: i32) -> (i32, i32) {
    %c0_i32 = arith.constant 0 : i32
    %c0_i32_0 = arith.constant 0 : i32
    return %arg0, %c0_i32 : i32, i32
  }
  func.func @transform_5(%arg0: i32) -> (i32, i32) {
    %c0_i32 = arith.constant 0 : i32
    %c0_i32_0 = arith.constant 0 : i32
    return %arg0, %c0_i32 : i32, i32
  }
  func.func @transform_6(%arg0: i32) -> (i32, i32) {
    %c0_i32 = arith.constant 0 : i32
    %c0_i32_0 = arith.constant 0 : i32
    return %arg0, %c0_i32 : i32, i32
  }
}

</mosaic_0001>

<llo_original>
// kernel: subband_attention.1
$region0: #{subband_attention.1}
  #allocation0 [shape = 'u32[]', space=smem, size = 0x4, offset = 0x4, fixed_abs, tag = 'smem constant byte address 0x4 - core index']
  #allocation1 [shape = 'u32[144,128]{1,0:T(1,128)}', space=vmem, size = 0x12000, scoped, tag = 'internal scratch']
  %s0 = inlined_call_operand.vmem [shape: f32[3], index: 0, kind: input, shape index: {}]
  %s1 = inlined_call_operand.vmem [shape: f32[1,2048], index: 1, kind: input, shape index: {}]
  %s2 = inlined_call_operand.vmem [shape: f32[1,2048], index: 2, kind: input, shape index: {}]
  %s3 = inlined_call_operand.vmem [shape: f32[1,2048], index: 3, kind: input, shape index: {}]
  %s4 = inlined_call_operand.vmem [shape: f32[1,2048], index: 4, kind: output, shape index: {0}]
  %s5 = inlined_call_operand.vmem [shape: f32[1,2048], index: 5, kind: output, shape index: {1}]
  %s6 = inlined_call_operand.vmem [shape: f32[1,2048], index: 6, kind: output, shape index: {2}]
  %7 = xla_tuple %s4, %s5, %s6
  %s8 = sld [smem:[#allocation0]]
  $region46: #{subband_attention.1} parent=0
    _
  %s10 = ssub.s32 1, %s8
  %s11 = scalar_select 0, %s10, %s8
  $region1: #{subband_attention.1} parent=0
    #allocation2 [shape = 'u8[512]{0}', space=smem, size = 0x200, scoped, tag = 'input window, operand 0, single buffered']
    #allocation3 [shape = 's32[1]{0}', space=sflag, size = 0x4, scoped, tag = 'scoped memory for subband_attention.1']
    %12 = vsyncpa [#allocation3], 0
    // Predicated region
    $region2: #{subband_attention.1} parent=1 // pred_check
      _
    $region3: #{subband_attention.1} parent=1 // pred_check_branch
      %14 = sbr.rel (0) target = $region5
    $region4: #{subband_attention.1} parent=1 // pred_region
      %s16 = ssub.s32 16, 16
      %17 = vsyncadd [#allocation3], %s16
      %s19 = sshll.u32 %s0, 4
      %s20 = int_to_ptr.vmem [resolvable:$true] %s19
      %22 = dma.vmem_to_smem %s20, 16, [#allocation2], [#allocation3]
    $region5: #{subband_attention.1} parent=1 // pred_fallthru
      _
    // Predicated region
    $region6: #{subband_attention.1} parent=1 // pred_check
      _
    $region7: #{subband_attention.1} parent=1 // pred_check_branch
      %24 = sbr.rel (0) target = $region9
    $region8: #{subband_attention.1} parent=1 // pred_region
      _
    $region9: #{subband_attention.1} parent=1 // pred_fallthru
      _
    // Predicated region
    $region10: #{subband_attention.1} parent=1 // pred_check
      _
    $region11: #{subband_attention.1} parent=1 // pred_check_branch
      %26 = sbr.rel (0) target = $region13
    $region12: #{subband_attention.1} parent=1 // pred_region
      _
    $region13: #{subband_attention.1} parent=1 // pred_fallthru
      _
    // Predicated region
    $region14: #{subband_attention.1} parent=1 // pred_check
      _
    $region15: #{subband_attention.1} parent=1 // pred_check_branch
      %28 = sbr.rel (0) target = $region17
    $region16: #{subband_attention.1} parent=1 // pred_region
      _
    $region17: #{subband_attention.1} parent=1 // pred_fallthru
      _
    // Predicated region
    $region18: #{subband_attention.1} parent=1 // pred_check
      _
    $region19: #{subband_attention.1} parent=1 // pred_check_branch
      %30 = sbr.rel (0) target = $region21
    $region20: #{subband_attention.1} parent=1 // pred_region
      %31 = dma.done [#allocation3], 16
    $region21: #{subband_attention.1} parent=1 // pred_fallthru
      _
    %32 = sfence
    %v33 = vld [vmem:[%s1] sm:$0xff]
    %v34 = vld [vmem:[%s1 + $0x8] sm:$0xff]
    %s35 = sld [smem:[#allocation2]]
    %v36 = vstv %s35
    %v37 = vmul.f32 %v33, %v36
    %v38 = vmul.f32 %v34, %v36
    %39 = vst [vmem:[%s4] sm:$0xff] %v37
    %40 = vst [vmem:[%s4 + $0x8] sm:$0xff] %v38
    %v41 = vld [vmem:[%s2] sm:$0xff]
    %v42 = vld [vmem:[%s2 + $0x8] sm:$0xff]
    %s43 = sld [smem:[#allocation2 + $0x1]]
    %v44 = vstv %s43
    %v45 = vmul.f32 %v41, %v44
    %v46 = vmul.f32 %v42, %v44
    %47 = vst [vmem:[%s5] sm:$0xff] %v45
    %48 = vst [vmem:[%s5 + $0x8] sm:$0xff] %v46
    %v49 = vld [vmem:[%s3] sm:$0xff]
    %v50 = vld [vmem:[%s3 + $0x8] sm:$0xff]
    %s51 = sld [smem:[#allocation2 + $0x2]]
    %v52 = vstv %s51
    %v53 = vmul.f32 %v49, %v52
    %v54 = vmul.f32 %v50, %v52
    %55 = vst [vmem:[%s6] sm:$0xff] %v53
    %56 = vst [vmem:[%s6 + $0x8] sm:$0xff] %v54
    // Predicated region
    $region22: #{subband_attention.1} parent=1 // pred_check
      _
    $region23: #{subband_attention.1} parent=1 // pred_check_branch
      %58 = sbr.rel (0) target = $region25
    $region24: #{subband_attention.1} parent=1 // pred_region
      _
    $region25: #{subband_attention.1} parent=1 // pred_fallthru
      _
    // Predicated region
    $region26: #{subband_attention.1} parent=1 // pred_check
      _
    $region27: #{subband_attention.1} parent=1 // pred_check_branch
      %60 = sbr.rel (0) target = $region29
    $region28: #{subband_attention.1} parent=1 // pred_region
      _
    $region29: #{subband_attention.1} parent=1 // pred_fallthru
      _
    // Predicated region
    $region30: #{subband_attention.1} parent=1 // pred_check
      _
    $region31: #{subband_attention.1} parent=1 // pred_check_branch
      %62 = sbr.rel (0) target = $region33
    $region32: #{subband_attention.1} parent=1 // pred_region
      _
    $region33: #{subband_attention.1} parent=1 // pred_fallthru
      _
    // Predicated region
    $region34: #{subband_attention.1} parent=1 // pred_check
      _
    $region35: #{subband_attention.1} parent=1 // pred_check_branch
      %64 = sbr.rel (0) target = $region37
    $region36: #{subband_attention.1} parent=1 // pred_region
      _
    $region37: #{subband_attention.1} parent=1 // pred_fallthru
      _
    // Predicated region
    $region38: #{subband_attention.1} parent=1 // pred_check
      _
    $region39: #{subband_attention.1} parent=1 // pred_check_branch
      %66 = sbr.rel (0) target = $region41
    $region40: #{subband_attention.1} parent=1 // pred_region
      _
    $region41: #{subband_attention.1} parent=1 // pred_fallthru
      _
    // Predicated region
    $region42: #{subband_attention.1} parent=1 // pred_check
      _
    $region43: #{subband_attention.1} parent=1 // pred_check_branch
      %68 = sbr.rel (0) target = $region45
    $region44: #{subband_attention.1} parent=1 // pred_region
      _
    $region45: #{subband_attention.1} parent=1 // pred_fallthru
      _
    %69 = vsyncpa [#allocation3], 1

</llo_original>
